<compile_context>
chip_gen: v6e
topology: v6e:2x2x1
jax: 0.10.0
libtpu: 0.0.40
codegen_flags: <defaults>
</compile_context>

<pallas_src>
import functools

import jax
import jax.numpy as jnp
from jax.experimental import pallas as pl
from jax.experimental.pallas import tpu as pltpu

LANES = 128
MAX_BLOCK_ROWS = 2048   # (2048, 128) f32 = 1 MiB per input per pipeline buffer
NUM_CORES = 2           # leading "parallel" grid axis; on 1-TC chips it is just
                        # one extra (fully masked-out) sequential grid step.


def _bce_mask_kernel(nrows_ref, pred_ref, iou_ref, sum_ref, cnt_ref,
                     acc_sum, acc_cnt, *, pos_lb, neg_ub, block_rows,
                     steps_per_core):
    core = pl.program_id(0)
    step = pl.program_id(1)
    gstep = core * steps_per_core + step          # unclamped global block index
    nrows = nrows_ref[0]                           # valid rows in the 2-D view

    @pl.when(step == 0)
    def _():
        acc_sum[...] = jnp.zeros_like(acc_sum)
        acc_cnt[...] = jnp.zeros_like(acc_cnt)

    def accumulate(extra_valid):
        pred = pred_ref[...].astype(jnp.float32)
        iou = iou_ref[...].astype(jnp.float32)
        sel = (iou >= pos_lb) | (iou <= neg_ub)
        if extra_valid is not None:
            sel = sel & extra_valid
        # target = round(iou) is exactly (iou > 0.5) for iou in [0, 1], so BCE
        # needs a single log:  elem = -max(log(pred if target else 1-pred), -100)
        chosen = jnp.where(iou > 0.5, pred, 1.0 - pred)
        elem = -jnp.maximum(jnp.log(chosen), -100.0)
        elem = jnp.where(sel, elem, 0.0)           # garbage/NaN selected away
        # Fold the block down to one vreg (one vector add per input vreg),
        # then a single tiny accumulator read-modify-write.
        acc_sum[...] += elem.reshape(-1, 8, LANES).sum(axis=0)
        acc_cnt[...] += sel.astype(jnp.int32).reshape(-1, 8, LANES).sum(axis=0)

    # Fast path: block lies entirely inside the valid rows -> no iota, no extra
    # masking work. Tail path (last real block, or clamped overhang steps on the
    # second core): mask by global row index.
    is_tail = (gstep + 1) * block_rows > nrows

    @pl.when(jnp.logical_not(is_tail))
    def _():
        accumulate(None)

    @pl.when(is_tail)
    def _():
        row = jax.lax.broadcasted_iota(jnp.int32, (block_rows, LANES), 0)
        accumulate(gstep * block_rows + row < nrows)

    @pl.when(step == pl.num_programs(1) - 1)
    def _():
        sum_ref[0] = acc_sum[...]
        cnt_ref[0] = acc_cnt[...]


def _masked_partials_jax(pred, iou, pos_lb, neg_ub):
    """Plain-JAX masked (sum, count) for the small unaligned tail / tiny inputs."""
    pred = pred.astype(jnp.float32)
    iou = iou.astype(jnp.float32)
    sel = (iou >= pos_lb) | (iou <= neg_ub)
    chosen = jnp.where(iou > 0.5, pred, 1.0 - pred)
    elem = -jnp.maximum(jnp.log(chosen), -100.0)
    return jnp.sum(jnp.where(sel, elem, 0.0)), jnp.sum(sel.astype(jnp.int32))


def classification_loss(pred, iou, config, *, max_block_rows=MAX_BLOCK_ROWS):
    """pred: (N,) probabilities in (0,1); iou: (N,) IoU values in [0,1].

    Returns sum(masked BCE) / count(mask) == BCELoss(pred[mask], round(iou[mask])).
    (If no element is selected the result is NaN, matching mean-over-empty.)
    """
    assert max_block_rows % 8 == 0
    pos_lb = float(config["positive_cls_lb"])
    neg_ub = float(config["negative_cls_ub"])

    n = pred.shape[0]
    sub = 8 * LANES                      # align the kernel region to full vregs
    rem = n % sub
    n_main = n - rem

    total_sum = jnp.float32(0.0)
    total_cnt = jnp.int32(0)

    if n_main > 0:
        rows = n_main // LANES           # multiple of 8 by construction
        pred2d = pred[:n_main].reshape(rows, LANES)
        iou2d = iou[:n_main].reshape(rows, LANES)

        block_rows = min(rows, max_block_rows)
        nblocks = pl.cdiv(rows, block_rows)
        steps_per_core = pl.cdiv(nblocks, NUM_CORES)

        kernel = functools.partial(
            _bce_mask_kernel,
            pos_lb=pos_lb,
            neg_ub=neg_ub,
            block_rows=block_rows,
            steps_per_core=steps_per_core,
        )

        # Clamp the block index so overhang steps on the second core never DMA
        # out of bounds; their contribution is masked to zero in-kernel.
        def in_map(c, i, nrows_ref):
            return (jnp.minimum(c * steps_per_core + i, nblocks - 1), 0)

        def out_map(c, i, nrows_ref):
            return (c, 0, 0)

        sums, cnts = pl.pallas_call(
            kernel,
            out_shape=(
                jax.ShapeDtypeStruct((NUM_CORES, 8, LANES), jnp.float32),
                jax.ShapeDtypeStruct((NUM_CORES, 8, LANES), jnp.int32),
            ),
            grid_spec=pltpu.PrefetchScalarGridSpec(
                num_scalar_prefetch=1,
                grid=(NUM_CORES, steps_per_core),
                in_specs=[
                    pl.BlockSpec((block_rows, LANES), in_map),
                    pl.BlockSpec((block_rows, LANES), in_map),
                ],
                out_specs=(
                    pl.BlockSpec((1, 8, LANES), out_map),
                    pl.BlockSpec((1, 8, LANES), out_map),
                ),
                scratch_shapes=[
                    pltpu.VMEM((8, LANES), jnp.float32),
                    pltpu.VMEM((8, LANES), jnp.int32),
                ],
            ),
            compiler_params=pltpu.CompilerParams(
                dimension_semantics=("parallel", "arbitrary"),
            ),
        )(jnp.array([rows], dtype=jnp.int32), pred2d, iou2d)

        total_sum = total_sum + jnp.sum(sums)
        total_cnt = total_cnt + jnp.sum(cnts)

    if rem:
        # <1024-element tail handled in plain JAX; avoids padding/copying the
        # full N-element arrays just for lane alignment.
        ts, tc = _masked_partials_jax(pred[n_main:], iou[n_main:], pos_lb, neg_ub)
        total_sum = total_sum + ts
        total_cnt = total_cnt + tc

    return (total_sum / total_cnt.astype(jnp.float32)).astype(jnp.float32)


def _reference_loss(pred, iou, config):
    """Plain-JAX reference of the PyTorch forward (two-log clamped BCE)."""
    mask = (iou >= config["positive_cls_lb"]) | (iou <= config["negative_cls_ub"])
    target = jnp.round(iou)
    log_p = jnp.maximum(jnp.log(pred), -100.0)
    log_1mp = jnp.maximum(jnp.log(1.0 - pred), -100.0)
    elem = -(target * log_p + (1.0 - target) * log_1mp)
    return jnp.sum(jnp.where(mask, elem, 0.0)) / jnp.sum(mask.astype(jnp.float32))


if __name__ == "__main__":
    # No learnable parameters in this module; only config thresholds.
    config = {"positive_cls_lb": 0.6, "negative_cls_ub": 0.45}

    key = jax.random.PRNGKey(0)
    k1, k2, k3, k4, k5, k6 = jax.random.split(key, 6)

    # Case 1: vreg-aligned N, single block per core's range.
    N1 = 2048
    pred1 = jax.nn.sigmoid(jax.random.normal(k1, (N1,), dtype=jnp.float32))
    iou1 = jax.random.uniform(k2, (N1,), dtype=jnp.float32)
    loss1 = classification_loss(pred1, iou1, config)
    jax.block_until_ready(loss1)
    ref1 = _reference_loss(pred1, iou1, config)
    assert jnp.allclose(loss1, ref1, rtol=1e-5, atol=1e-5), (loss1, ref1)

    # Case 2: unaligned N with default block size (plain-JAX tail path).
    N2 = 4200
    pred2 = jax.nn.sigmoid(jax.random.normal(k3, (N2,), dtype=jnp.float32))
    iou2 = jax.random.uniform(k4, (N2,), dtype=jnp.float32)
    loss2 = classification_loss(pred2, iou2, config)
    jax.block_until_ready(loss2)
    ref2 = _reference_loss(pred2, iou2, config)
    assert jnp.allclose(loss2, ref2, rtol=1e-5, atol=1e-5), (loss2, ref2)

    # Case 3: small block size to exercise multi-step grid, an odd block count
    # (clamped overhang step on the second core), a partial last block, and the
    # unaligned tail — all at a tiny size.
    N3 = 40 * 128 + 53
    pred3 = jax.nn.sigmoid(jax.random.normal(k5, (N3,), dtype=jnp.float32))
    iou3 = jax.random.uniform(k6, (N3,), dtype=jnp.float32)
    loss3 = classification_loss(pred3, iou3, config, max_block_rows=16)
    jax.block_until_ready(loss3)
    ref3 = _reference_loss(pred3, iou3, config)
    assert jnp.allclose(loss3, ref3, rtol=1e-5, atol=1e-5), (loss3, ref3)

    print("KERNEL_OK")
</pallas_src>

<mosaic_0001>
module attributes {stable_mosaic.version = 11 : i64} {
  func.func @_bce_mask_kernel(%arg0: i32, %arg1: i32, %arg2: memref<1xi32, #tpu.memory_space<smem>>, %arg3: memref<16x128xf32, #tpu.memory_space<vmem>>, %arg4: memref<16x128xf32, #tpu.memory_space<vmem>>, %arg5: memref<1x8x128xf32, #tpu.memory_space<vmem>>, %arg6: memref<1x8x128xi32, #tpu.memory_space<vmem>>, %arg7: memref<8x128xf32, #tpu.memory_space<vmem>>, %arg8: memref<8x128xi32, #tpu.memory_space<vmem>>) attributes {dimension_semantics = [#tpu.dimension_semantics<parallel>, #tpu.dimension_semantics<arbitrary>], iteration_bounds = array<i64: 2, 1>, scalar_prefetch = 1 : i64, scratch_operands = 2 : i64, tpu.core_type = #tpu.core_type<tc>, window_params = [{transform_indices = @transform_0, window_bounds = array<i64: 16, 128>}, {transform_indices = @transform_1, window_bounds = array<i64: 16, 128>}, {transform_indices = @transform_2, window_bounds = array<i64: 1, 8, 128>}, {transform_indices = @transform_3, window_bounds = array<i64: 1, 8, 128>}]} {
    %c1_i32 = arith.constant 1 : i32
    %0 = arith.muli %arg0, %c1_i32 : i32
    %1 = arith.addi %0, %arg1 : i32
    %c0 = arith.constant 0 : index
    %2 = memref.load %arg2[%c0] : memref<1xi32, #tpu.memory_space<smem>>
    %c0_i32 = arith.constant 0 : i32
    %3 = arith.cmpi eq, %arg1, %c0_i32 : i32
    %4 = arith.extui %3 : i1 to i32
    %c0_i32_0 = arith.constant 0 : i32
    %5 = arith.cmpi ne, %4, %c0_i32_0 : i32
    scf.if %5 {
      %cst = arith.constant 0.000000e+00 : f32
      %17 = vector.broadcast %cst : f32 to vector<8x128xf32>
      %c0_6 = arith.constant 0 : index
      %c0_7 = arith.constant 0 : index
      %18 = vector.load %arg7[%c0_6, %c0_7] : memref<8x128xf32, #tpu.memory_space<vmem>>, vector<8x128xf32>
      tpu.vector_store %arg7[%c0_6, %c0_7], %17 {strides = array<i32>} : memref<8x128xf32, #tpu.memory_space<vmem>>, vector<8x128xf32>,
      %c0_i32_8 = arith.constant 0 : i32
      %19 = vector.broadcast %c0_i32_8 : i32 to vector<8x128xi32>
      %c0_9 = arith.constant 0 : index
      %c0_10 = arith.constant 0 : index
      %20 = vector.load %arg8[%c0_9, %c0_10] : memref<8x128xi32, #tpu.memory_space<vmem>>, vector<8x128xi32>
      tpu.vector_store %arg8[%c0_9, %c0_10], %19 {strides = array<i32>} : memref<8x128xi32, #tpu.memory_space<vmem>>, vector<8x128xi32>,
    } else {
    }
    %c1_i32_1 = arith.constant 1 : i32
    %6 = arith.addi %1, %c1_i32_1 : i32
    %c16_i32 = arith.constant 16 : i32
    %7 = arith.muli %6, %c16_i32 : i32
    %8 = arith.cmpi sgt, %7, %2 : i32
    %true = arith.constant true
    %9 = arith.xori %8, %true : i1
    %10 = arith.extui %9 : i1 to i32
    %c0_i32_2 = arith.constant 0 : i32
    %11 = arith.cmpi ne, %10, %c0_i32_2 : i32
    scf.if %11 {
      %c0_6 = arith.constant 0 : index
      %c0_7 = arith.constant 0 : index
      %17 = vector.load %arg3[%c0_6, %c0_7] : memref<16x128xf32, #tpu.memory_space<vmem>>, vector<16x128xf32>
      %c0_8 = arith.constant 0 : index
      %c0_9 = arith.constant 0 : index
      %18 = vector.load %arg4[%c0_8, %c0_9] : memref<16x128xf32, #tpu.memory_space<vmem>>, vector<16x128xf32>
      %cst = arith.constant 6.000000e-01 : f32
      %19 = vector.broadcast %cst : f32 to vector<16x128xf32>
      %20 = arith.cmpf oge, %18, %19 : vector<16x128xf32>
      %cst_10 = arith.constant 4.500000e-01 : f32
      %21 = vector.broadcast %cst_10 : f32 to vector<16x128xf32>
      %22 = arith.cmpf ole, %18, %21 : vector<16x128xf32>
      %23 = arith.ori %20, %22 : vector<16x128xi1>
      %cst_11 = arith.constant 5.000000e-01 : f32
      %24 = vector.broadcast %cst_11 : f32 to vector<16x128xf32>
      %25 = arith.cmpf ogt, %18, %24 : vector<16x128xf32>
      %cst_12 = arith.constant 1.000000e+00 : f32
      %26 = vector.broadcast %cst_12 : f32 to vector<16x128xf32>
      %27 = arith.subf %26, %17 : vector<16x128xf32>
      %28 = arith.select %25, %17, %27 : vector<16x128xi1>, vector<16x128xf32>
      %29 = math.log %28 : vector<16x128xf32>
      %cst_13 = arith.constant -1.000000e+02 : f32
      %30 = vector.broadcast %cst_13 : f32 to vector<16x128xf32>
      %31 = arith.maximumf %29, %30 : vector<16x128xf32>
      %cst_14 = arith.constant 0.000000e+00 : f32
      %32 = vector.broadcast %cst_14 : f32 to vector<16x128xf32>
      %33 = arith.subf %32, %31 : vector<16x128xf32>
      %cst_15 = arith.constant 0.000000e+00 : f32
      %34 = vector.broadcast %cst_15 : f32 to vector<16x128xf32>
      %35 = arith.select %23, %33, %34 : vector<16x128xi1>, vector<16x128xf32>
      %c0_16 = arith.constant 0 : index
      %c0_17 = arith.constant 0 : index
      %36 = vector.load %arg7[%c0_16, %c0_17] : memref<8x128xf32, #tpu.memory_space<vmem>>, vector<8x128xf32>
      %37 = vector.shape_cast %35 : vector<16x128xf32> to vector<2x8x128xf32>
      %cst_18 = arith.constant dense<0.000000e+00> : vector<8x128xf32>
      %38 = vector.multi_reduction <add>, %37, %cst_18 [0] : vector<2x8x128xf32> to vector<8x128xf32>
      %39 = arith.addf %36, %38 : vector<8x128xf32>
      %c0_19 = arith.constant 0 : index
      %c0_20 = arith.constant 0 : index
      %40 = vector.load %arg7[%c0_19, %c0_20] : memref<8x128xf32, #tpu.memory_space<vmem>>, vector<8x128xf32>
      tpu.vector_store %arg7[%c0_19, %c0_20], %39 {strides = array<i32>} : memref<8x128xf32, #tpu.memory_space<vmem>>, vector<8x128xf32>,
      %c0_21 = arith.constant 0 : index
      %c0_22 = arith.constant 0 : index
      %41 = vector.load %arg8[%c0_21, %c0_22] : memref<8x128xi32, #tpu.memory_space<vmem>>, vector<8x128xi32>
      %42 = arith.extui %23 : vector<16x128xi1> to vector<16x128xi32>
      %43 = vector.shape_cast %42 : vector<16x128xi32> to vector<2x8x128xi32>
      %cst_23 = arith.constant dense<0> : vector<8x128xi32>
      %44 = vector.multi_reduction <add>, %43, %cst_23 [0] : vector<2x8x128xi32> to vector<8x128xi32>
      %45 = arith.addi %41, %44 : vector<8x128xi32>
      %c0_24 = arith.constant 0 : index
      %c0_25 = arith.constant 0 : index
      %46 = vector.load %arg8[%c0_24, %c0_25] : memref<8x128xi32, #tpu.memory_space<vmem>>, vector<8x128xi32>
      tpu.vector_store %arg8[%c0_24, %c0_25], %45 {strides = array<i32>} : memref<8x128xi32, #tpu.memory_space<vmem>>, vector<8x128xi32>,
    } else {
    }
    %12 = arith.extui %8 : i1 to i32
    %c0_i32_3 = arith.constant 0 : i32
    %13 = arith.cmpi ne, %12, %c0_i32_3 : i32
    scf.if %13 {
      %17 = tpu.iota {dimensions = array<i32: 0>} : vector<16x128xi32>
      %c16_i32_6 = arith.constant 16 : i32
      %18 = arith.muli %1, %c16_i32_6 : i32
      %19 = vector.broadcast %18 : i32 to vector<16x128xi32>
      %20 = arith.addi %19, %17 : vector<16x128xi32>
      %21 = vector.broadcast %2 : i32 to vector<16x128xi32>
      %22 = arith.cmpi slt, %20, %21 : vector<16x128xi32>
      %c0_7 = arith.constant 0 : index
      %c0_8 = arith.constant 0 : index
      %23 = vector.load %arg3[%c0_7, %c0_8] : memref<16x128xf32, #tpu.memory_space<vmem>>, vector<16x128xf32>
      %c0_9 = arith.constant 0 : index
      %c0_10 = arith.constant 0 : index
      %24 = vector.load %arg4[%c0_9, %c0_10] : memref<16x128xf32, #tpu.memory_space<vmem>>, vector<16x128xf32>
      %cst = arith.constant 6.000000e-01 : f32
      %25 = vector.broadcast %cst : f32 to vector<16x128xf32>
      %26 = arith.cmpf oge, %24, %25 : vector<16x128xf32>
      %cst_11 = arith.constant 4.500000e-01 : f32
      %27 = vector.broadcast %cst_11 : f32 to vector<16x128xf32>
      %28 = arith.cmpf ole, %24, %27 : vector<16x128xf32>
      %29 = arith.ori %26, %28 : vector<16x128xi1>
      %30 = arith.andi %29, %22 : vector<16x128xi1>
      %cst_12 = arith.constant 5.000000e-01 : f32
      %31 = vector.broadcast %cst_12 : f32 to vector<16x128xf32>
      %32 = arith.cmpf ogt, %24, %31 : vector<16x128xf32>
      %cst_13 = arith.constant 1.000000e+00 : f32
      %33 = vector.broadcast %cst_13 : f32 to vector<16x128xf32>
      %34 = arith.subf %33, %23 : vector<16x128xf32>
      %35 = arith.select %32, %23, %34 : vector<16x128xi1>, vector<16x128xf32>
      %36 = math.log %35 : vector<16x128xf32>
      %cst_14 = arith.constant -1.000000e+02 : f32
      %37 = vector.broadcast %cst_14 : f32 to vector<16x128xf32>
      %38 = arith.maximumf %36, %37 : vector<16x128xf32>
      %cst_15 = arith.constant 0.000000e+00 : f32
      %39 = vector.broadcast %cst_15 : f32 to vector<16x128xf32>
      %40 = arith.subf %39, %38 : vector<16x128xf32>
      %cst_16 = arith.constant 0.000000e+00 : f32
      %41 = vector.broadcast %cst_16 : f32 to vector<16x128xf32>
      %42 = arith.select %30, %40, %41 : vector<16x128xi1>, vector<16x128xf32>
      %c0_17 = arith.constant 0 : index
      %c0_18 = arith.constant 0 : index
      %43 = vector.load %arg7[%c0_17, %c0_18] : memref<8x128xf32, #tpu.memory_space<vmem>>, vector<8x128xf32>
      %44 = vector.shape_cast %42 : vector<16x128xf32> to vector<2x8x128xf32>
      %cst_19 = arith.constant dense<0.000000e+00> : vector<8x128xf32>
      %45 = vector.multi_reduction <add>, %44, %cst_19 [0] : vector<2x8x128xf32> to vector<8x128xf32>
      %46 = arith.addf %43, %45 : vector<8x128xf32>
      %c0_20 = arith.constant 0 : index
      %c0_21 = arith.constant 0 : index
      %47 = vector.load %arg7[%c0_20, %c0_21] : memref<8x128xf32, #tpu.memory_space<vmem>>, vector<8x128xf32>
      tpu.vector_store %arg7[%c0_20, %c0_21], %46 {strides = array<i32>} : memref<8x128xf32, #tpu.memory_space<vmem>>, vector<8x128xf32>,
      %c0_22 = arith.constant 0 : index
      %c0_23 = arith.constant 0 : index
      %48 = vector.load %arg8[%c0_22, %c0_23] : memref<8x128xi32, #tpu.memory_space<vmem>>, vector<8x128xi32>
      %49 = arith.extui %30 : vector<16x128xi1> to vector<16x128xi32>
      %50 = vector.shape_cast %49 : vector<16x128xi32> to vector<2x8x128xi32>
      %cst_24 = arith.constant dense<0> : vector<8x128xi32>
      %51 = vector.multi_reduction <add>, %50, %cst_24 [0] : vector<2x8x128xi32> to vector<8x128xi32>
      %52 = arith.addi %48, %51 : vector<8x128xi32>
      %c0_25 = arith.constant 0 : index
      %c0_26 = arith.constant 0 : index
      %53 = vector.load %arg8[%c0_25, %c0_26] : memref<8x128xi32, #tpu.memory_space<vmem>>, vector<8x128xi32>
      tpu.vector_store %arg8[%c0_25, %c0_26], %52 {strides = array<i32>} : memref<8x128xi32, #tpu.memory_space<vmem>>, vector<8x128xi32>,
    } else {
    }
    %c0_i32_4 = arith.constant 0 : i32
    %14 = arith.cmpi eq, %arg1, %c0_i32_4 : i32
    %15 = arith.extui %14 : i1 to i32
    %c0_i32_5 = arith.constant 0 : i32
    %16 = arith.cmpi ne, %15, %c0_i32_5 : i32
    scf.if %16 {
      %c0_6 = arith.constant 0 : index
      %c0_7 = arith.constant 0 : index
      %17 = vector.load %arg7[%c0_6, %c0_7] : memref<8x128xf32, #tpu.memory_space<vmem>>, vector<8x128xf32>
      %c0_8 = arith.constant 0 : index
      %c0_9 = arith.constant 0 : index
      %c0_10 = arith.constant 0 : index
      %18 = vector.load %arg5[%c0_8, %c0_9, %c0_10] : memref<1x8x128xf32, #tpu.memory_space<vmem>>, vector<1x8x128xf32>
      %19 = vector.shape_cast %18 : vector<1x8x128xf32> to vector<8x128xf32>
      %20 = vector.shape_cast %17 : vector<8x128xf32> to vector<1x8x128xf32>
      tpu.vector_store %arg5[%c0_8, %c0_9, %c0_10], %20 {strides = array<i32>} : memref<1x8x128xf32, #tpu.memory_space<vmem>>, vector<1x8x128xf32>,
      %c0_11 = arith.constant 0 : index
      %c0_12 = arith.constant 0 : index
      %21 = vector.load %arg8[%c0_11, %c0_12] : memref<8x128xi32, #tpu.memory_space<vmem>>, vector<8x128xi32>
      %c0_13 = arith.constant 0 : index
      %c0_14 = arith.constant 0 : index
      %c0_15 = arith.constant 0 : index
      %22 = vector.load %arg6[%c0_13, %c0_14, %c0_15] : memref<1x8x128xi32, #tpu.memory_space<vmem>>, vector<1x8x128xi32>
      %23 = vector.shape_cast %22 : vector<1x8x128xi32> to vector<8x128xi32>
      %24 = vector.shape_cast %21 : vector<8x128xi32> to vector<1x8x128xi32>
      tpu.vector_store %arg6[%c0_13, %c0_14, %c0_15], %24 {strides = array<i32>} : memref<1x8x128xi32, #tpu.memory_space<vmem>>, vector<1x8x128xi32>,
    } else {
    }
    return
  }
  func.func @transform_0(%arg0: i32, %arg1: i32, %arg2: memref<1xi32, #tpu.memory_space<smem>>) -> (i32, i32) {
    %c1_i32 = arith.constant 1 : i32
    %0 = arith.muli %arg0, %c1_i32 : i32
    %1 = arith.addi %0, %arg1 : i32
    %c0_i32 = arith.constant 0 : i32
    %2 = arith.minsi %1, %c0_i32 : i32
    %c0_i32_0 = arith.constant 0 : i32
    %c0_i32_1 = arith.constant 0 : i32
    return %2, %c0_i32_0 : i32, i32
  }
  func.func @transform_1(%arg0: i32, %arg1: i32, %arg2: memref<1xi32, #tpu.memory_space<smem>>) -> (i32, i32) {
    %c1_i32 = arith.constant 1 : i32
    %0 = arith.muli %arg0, %c1_i32 : i32
    %1 = arith.addi %0, %arg1 : i32
    %c0_i32 = arith.constant 0 : i32
    %2 = arith.minsi %1, %c0_i32 : i32
    %c0_i32_0 = arith.constant 0 : i32
    %c0_i32_1 = arith.constant 0 : i32
    return %2, %c0_i32_0 : i32, i32
  }
  func.func @transform_2(%arg0: i32, %arg1: i32, %arg2: memref<1xi32, #tpu.memory_space<smem>>) -> (i32, i32, i32) {
    %c0_i32 = arith.constant 0 : i32
    %c0_i32_0 = arith.constant 0 : i32
    %c0_i32_1 = arith.constant 0 : i32
    return %arg0, %c0_i32, %c0_i32_0 : i32, i32, i32
  }
  func.func @transform_3(%arg0: i32, %arg1: i32, %arg2: memref<1xi32, #tpu.memory_space<smem>>) -> (i32, i32, i32) {
    %c0_i32 = arith.constant 0 : i32
    %c0_i32_0 = arith.constant 0 : i32
    %c0_i32_1 = arith.constant 0 : i32
    return %arg0, %c0_i32, %c0_i32_0 : i32, i32, i32
  }
}

</mosaic_0001>

<llo_original>
// kernel: tpu_custom_call.1
$region0: #{tpu_custom_call.1}
  #allocation0 [shape = 'u32[]', space=smem, size = 0x4, offset = 0x4, fixed_abs, tag = 'smem constant byte address 0x4 - core index']
  #allocation1 [shape = 'u32[144,128]{1,0:T(1,128)}', space=vmem, size = 0x12000, scoped, tag = 'internal scratch']
  #allocation2 [shape = 'f32[8,128]{1,0:T(8,128)}', space=vmem, size = 0x1000, scoped, tag = 'scratch operand']
  #allocation3 [shape = 's32[8,128]{1,0:T(8,128)}', space=vmem, size = 0x1000, scoped, tag = 'scratch operand']
  #allocation4 [shape = 's32[1]{0}', space=sflag, size = 0x4, scoped, tag = 'scoped memory for tpu_custom_call.1']
  #allocation5 [shape = 's32[1]{0:T(128)S(6)}', space=smem, size = 0x200, scoped, tag = 'prefetched SMEM operand 0']
  %s0 = inlined_call_operand.<no memory space> [shape: s32[1], index: 0, kind: input, shape index: {}]
  %s1 = inlined_call_operand.hbm [shape: f32[16,128], index: 1, kind: input, shape index: {}]
  %s2 = inlined_call_operand.hbm [shape: f32[16,128], index: 2, kind: input, shape index: {}]
  %s3 = inlined_call_operand.hbm [shape: f32[2,8,128], index: 3, kind: output, shape index: {0}]
  %s4 = inlined_call_operand.hbm [shape: s32[2,8,128], index: 4, kind: output, shape index: {1}]
  %5 = xla_tuple %s3, %s4
  %s6 = sld [smem:[#allocation0]]
  $region73: #{tpu_custom_call.1} parent=0
    _
  %s8 = ssub.s32 1, %s6
  %s9 = scalar_select 0, %s8, %s6
  %10 = sst [smem:[#allocation5]] %s0
  $region1: #{tpu_custom_call.1} parent=0
    #allocation6 [shape = 'u8[16384]{0}', space=vmem, size = 0x4000, scoped, tag = 'input window, operand 1']
    #allocation7 [shape = 's32[2]{0}', space=sflag, size = 0x8, scoped, tag = 'scoped memory for tpu_custom_call.1']
    #allocation8 [shape = 's32[2]{0}', space=sflag, size = 0x8, scoped, tag = 'scoped memory for tpu_custom_call.1']
    #allocation9 [shape = 'u8[16384]{0}', space=vmem, size = 0x4000, scoped, tag = 'input window, operand 2']
    #allocation10 [shape = 's32[2]{0}', space=sflag, size = 0x8, scoped, tag = 'scoped memory for tpu_custom_call.1']
    #allocation11 [shape = 'u8[8192]{0}', space=vmem, size = 0x2000, scoped, tag = 'output window, operand 0']
    #allocation12 [shape = 'u8[8192]{0}', space=vmem, size = 0x2000, scoped, tag = 'output window, operand 1']
    #allocation13 [shape = 's32[2]{0}', space=sflag, size = 0x8, scoped, tag = 'scoped memory for tpu_custom_call.1']
    %11 = vsyncpa [#allocation7], 0
    %s12 = scalar_lea.sflag [#allocation7], 1
    %13 = vsyncpa %s12, 0
    %14 = vsyncpa [#allocation10], 0
    %s15 = scalar_lea.sflag [#allocation10], 1
    %16 = vsyncpa %s15, 0
    %17 = vsyncpa [#allocation8], 0
    %s18 = scalar_lea.sflag [#allocation8], 1
    %19 = vsyncpa %s18, 0
    %20 = vsyncpa [#allocation13], 0
    %s21 = scalar_lea.sflag [#allocation13], 1
    %22 = vsyncpa %s21, 0
    loop: start=0, step=1, limit=4
    $region2: #{tpu_custom_call.1} parent=1 // loop_pre_header
      _
    $region3: #{tpu_custom_call.1} parent=1 // loop_header
      %s24 = sphi 0, %s28
      %p25 = scmp.ge.s32.totalorder %s24, 4
      %s31 = sphi 0, %s43
      %s32 = sphi 0, %s39
      %s33 = sphi 0, %s31
      %s34 = sphi 0, %s32
      %s35 = sphi 0, %s33
      %s36 = sphi 0, %s34
      %s52 = sphi 0, %s54
      %s55 = sphi 0, %s52
      %s56 = sphi 0, %s55
      %s72 = sphi 0, %s56
      %s84 = sphi 0, %s86
      %s87 = sphi 0, %s84
      %s88 = sphi 0, %s87
      %s104 = sphi 0, %s88
      %s110 = sphi 0, %s112
      %s113 = sphi 0, %s110
      %s114 = sphi 0, %s113
      %s130 = sphi 0, %s114
      %s136 = sphi 0, %s138
      %s139 = sphi 0, %s136
      %s140 = sphi 0, %s139
      %s156 = sphi 0, %s140
    $region4: #{tpu_custom_call.1} parent=1 // loop_header_branch
      %27 = sbr.rel (%p25) target = $region8
    $region5: #{tpu_custom_call.1} parent=1 // loop_body
      %s29 = ssub.s32 %s24, 1
      %s30 = ssub.s32 %s24, 2
      %s37 = sadd.s32 1, %s32
      %p38 = scmp.ge.s32.totalorder %s37, 1
      %s39 = scalar_select %p38, 0, %s37
      %s40 = sadd.s32 1, %s31
      %s41 = scalar_select %p38, %s40, %s31
      %p42 = scmp.ge.s32.totalorder %s41, 2
      %s43 = scalar_select %p42, 0, %s41
      %s44 = sadd.s32 %s31, %s32
      %p45 = scmp.lt.s32.totalorder %s44, 0
      %s46 = scalar_select %p45, %s44, 0
      %s47 = sadd.s32 %s43, %s39
      %p48 = scmp.lt.s32.totalorder %s47, 0
      %s49 = scalar_select %p48, %s47, 0
      %s50 = ssub.s32 %s46, %s49
      %p51 = scmp.eq.s32.totalorder %s50, 0
      %s53 = sadd.s32 %s52, 1
      %s54 = scalar_select %p51, %s52, %s53
      %p57 = pneg %p51
      %p58 = scmp.eq.s32.totalorder %s24, 1
      %p59 = por %p57, %p58
      %p60 = scmp.ne.s32.totalorder %s52, %s55
      %p61 = scmp.eq.s32.totalorder %s24, 0
      %p62 = por %p60, %p61
      %p63 = scmp.ne.s32.totalorder %s52, %s55
      %p64 = scmp.eq.s32.totalorder %s29, 1
      %p65 = por %p63, %p64
      %p66 = scmp.ne.s32.totalorder %s55, %s56
      %p67 = scmp.eq.s32.totalorder %s29, 0
      %p68 = por %p66, %p67
      %p69 = scmp.ne.s32.totalorder %s55, %s56
      %p70 = scmp.eq.s32.totalorder %s30, 1
      %p71 = por %p69, %p70
      %p73 = scmp.ne.s32.totalorder %s56, %s72
      %p74 = scmp.eq.s32.totalorder %s30, 0
      %p75 = por %p73, %p74
      %s76 = sadd.s32 %s31, %s32
      %p77 = scmp.lt.s32.totalorder %s76, 0
      %s78 = scalar_select %p77, %s76, 0
      %s79 = sadd.s32 %s43, %s39
      %p80 = scmp.lt.s32.totalorder %s79, 0
      %s81 = scalar_select %p80, %s79, 0
      %s82 = ssub.s32 %s78, %s81
      %p83 = scmp.eq.s32.totalorder %s82, 0
      %s85 = sadd.s32 %s84, 1
      %s86 = scalar_select %p83, %s84, %s85
      %p89 = pneg %p83
      %p90 = scmp.eq.s32.totalorder %s24, 1
      %p91 = por %p89, %p90
      %p92 = scmp.ne.s32.totalorder %s84, %s87
      %p93 = scmp.eq.s32.totalorder %s24, 0
      %p94 = por %p92, %p93
      %p95 = scmp.ne.s32.totalorder %s84, %s87
      %p96 = scmp.eq.s32.totalorder %s29, 1
      %p97 = por %p95, %p96
      %p98 = scmp.ne.s32.totalorder %s87, %s88
      %p99 = scmp.eq.s32.totalorder %s29, 0
      %p100 = por %p98, %p99
      %p101 = scmp.ne.s32.totalorder %s87, %s88
      %p102 = scmp.eq.s32.totalorder %s30, 1
      %p103 = por %p101, %p102
      %p105 = scmp.ne.s32.totalorder %s88, %s104
      %p106 = scmp.eq.s32.totalorder %s30, 0
      %p107 = por %p105, %p106
      %s108 = ssub.s32 %s31, %s43
      %p109 = scmp.eq.s32.totalorder %s108, 0
      %s111 = sadd.s32 %s110, 1
      %s112 = scalar_select %p109, %s110, %s111
      %p115 = pneg %p109
      %p116 = scmp.eq.s32.totalorder %s24, 1
      %p117 = por %p115, %p116
      %p118 = scmp.ne.s32.totalorder %s110, %s113
      %p119 = scmp.eq.s32.totalorder %s24, 0
      %p120 = por %p118, %p119
      %p121 = scmp.ne.s32.totalorder %s110, %s113
      %p122 = scmp.eq.s32.totalorder %s29, 1
      %p123 = por %p121, %p122
      %p124 = scmp.ne.s32.totalorder %s113, %s114
      %p125 = scmp.eq.s32.totalorder %s29, 0
      %p126 = por %p124, %p125
      %p127 = scmp.ne.s32.totalorder %s113, %s114
      %p128 = scmp.eq.s32.totalorder %s30, 1
      %p129 = por %p127, %p128
      %p131 = scmp.ne.s32.totalorder %s114, %s130
      %p132 = scmp.eq.s32.totalorder %s30, 0
      %p133 = por %p131, %p132
      %s134 = ssub.s32 %s31, %s43
      %p135 = scmp.eq.s32.totalorder %s134, 0
      %s137 = sadd.s32 %s136, 1
      %s138 = scalar_select %p135, %s136, %s137
      %p141 = pneg %p135
      %p142 = scmp.eq.s32.totalorder %s24, 1
      %p143 = por %p141, %p142
      %p144 = scmp.ne.s32.totalorder %s136, %s139
      %p145 = scmp.eq.s32.totalorder %s24, 0
      %p146 = por %p144, %p145
      %p147 = scmp.ne.s32.totalorder %s136, %s139
      %p148 = scmp.eq.s32.totalorder %s29, 1
      %p149 = por %p147, %p148
      %p150 = scmp.ne.s32.totalorder %s139, %s140
      %p151 = scmp.eq.s32.totalorder %s29, 0
      %p152 = por %p150, %p151
      %p153 = scmp.ne.s32.totalorder %s139, %s140
      %p154 = scmp.eq.s32.totalorder %s30, 1
      %p155 = por %p153, %p154
      %p157 = scmp.ne.s32.totalorder %s140, %s156
      %p158 = scmp.eq.s32.totalorder %s30, 0
      %p159 = por %p157, %p158
      %p160 = scmp.le.s32.totalorder 1, %s24
      %p161 = scmp.lt.s32.totalorder %s24, 3
      %p162 = pnand %p160, %p161
      %p163 = pneg %p162
      // Predicated region
      $region9: #{tpu_custom_call.1} parent=5 // pred_check
        _
      $region10: #{tpu_custom_call.1} parent=5 // pred_check_branch
        %165 = sbr.rel (%p162) target = $region12
      $region11: #{tpu_custom_call.1} parent=5 // pred_region
        %s166 = ssub.s32 %s24, 1
      $region12: #{tpu_custom_call.1} parent=5 // pred_fallthru
        _
      %p167 = scmp.lt.s32.totalorder %s24, 2
      // Predicated region
      $region13: #{tpu_custom_call.1} parent=5 // pred_check
        %p168 = pneg %p167
      $region14: #{tpu_custom_call.1} parent=5 // pred_check_branch
        %170 = sbr.rel (%p168) target = $region16
      $region15: #{tpu_custom_call.1} parent=5 // pred_region
        // Predicated region
        $region17: #{tpu_custom_call.1} parent=15 // pred_check
          %p171 = pneg %p62
        $region18: #{tpu_custom_call.1} parent=15 // pred_check_branch
          %173 = sbr.rel (%p171) target = $region20
        $region19: #{tpu_custom_call.1} parent=15 // pred_region
          %s174 = sand.u32 %s52, 1
          %s175 = scalar_lea.sflag [#allocation7], %s174
          %s176 = sand.u32 %s52, 1
          %s177 = smul.addr %s176, 16
          %s178 = scalar_lea.vmem [#allocation6], %s177
          %s179 = sadd.s32 %s31, %s32
          %p180 = scmp.lt.s32.totalorder %s179, 0
          %s181 = scalar_select %p180, %s179, 0
          %s182 = smul.u32 2, %s181
          %s184 = ssub.s32 256, 256
          %185 = vsyncadd %s175, %s184
          %s186 = smul.addr %s182, 128
          %s187 = scalar_lea.hbm %s1, %s186
          %s188 = sshll.u32 %s178, 4
          %s189 = int_to_ptr.vmem [resolvable:$true] %s188
          %194 = dma.hbm_to_vmem [thread:$0]  %s187, 256, %s189, %s175, 128, 128, 8
        $region20: #{tpu_custom_call.1} parent=15 // pred_fallthru
          _
        // Predicated region
        $region21: #{tpu_custom_call.1} parent=15 // pred_check
          %p195 = pneg %p94
        $region22: #{tpu_custom_call.1} parent=15 // pred_check_branch
          %197 = sbr.rel (%p195) target = $region24
        $region23: #{tpu_custom_call.1} parent=15 // pred_region
          %s198 = sand.u32 %s84, 1
          %s199 = scalar_lea.sflag [#allocation10], %s198
          %s200 = sand.u32 %s84, 1
          %s201 = smul.addr %s200, 16
          %s202 = scalar_lea.vmem [#allocation9], %s201
          %s203 = sadd.s32 %s31, %s32
          %p204 = scmp.lt.s32.totalorder %s203, 0
          %s205 = scalar_select %p204, %s203, 0
          %s206 = smul.u32 2, %s205
          %s208 = ssub.s32 256, 256
          %209 = vsyncadd %s199, %s208
          %s210 = smul.addr %s206, 128
          %s211 = scalar_lea.hbm %s2, %s210
          %s212 = sshll.u32 %s202, 4
          %s213 = int_to_ptr.vmem [resolvable:$true] %s212
          %218 = dma.hbm_to_vmem [thread:$0]  %s211, 256, %s213, %s199, 128, 128, 8
        $region24: #{tpu_custom_call.1} parent=15 // pred_fallthru
          _
      $region16: #{tpu_custom_call.1} parent=5 // pred_fallthru
        _
      %p219 = scmp.le.s32.totalorder 1, %s24
      %p220 = scmp.lt.s32.totalorder %s24, 3
      %p221 = pnand %p219, %p220
      %p222 = pneg %p221
      // Predicated region
      $region25: #{tpu_custom_call.1} parent=5 // pred_check
        _
      $region26: #{tpu_custom_call.1} parent=5 // pred_check_branch
        %224 = sbr.rel (%p221) target = $region28
      $region27: #{tpu_custom_call.1} parent=5 // pred_region
        %s225 = ssub.s32 %s24, 1
        %s226 = sand.u32 %s55, 1
        %s227 = scalar_lea.sflag [#allocation7], %s226
        %s228 = sand.u32 %s55, 1
        %s229 = smul.addr %s228, 16
        %s230 = scalar_lea.vmem [#allocation6], %s229
        // Predicated region
        $region29: #{tpu_custom_call.1} parent=27 // pred_check
          %p231 = pneg %p68
        $region30: #{tpu_custom_call.1} parent=27 // pred_check_branch
          %233 = sbr.rel (%p231) target = $region32
        $region31: #{tpu_custom_call.1} parent=27 // pred_region
          %234 = dma.done %s227, 256
        $region32: #{tpu_custom_call.1} parent=27 // pred_fallthru
          _
        %s235 = sand.u32 %s87, 1
        %s236 = scalar_lea.sflag [#allocation10], %s235
        %s237 = sand.u32 %s87, 1
        %s238 = smul.addr %s237, 16
        %s239 = scalar_lea.vmem [#allocation9], %s238
        // Predicated region
        $region33: #{tpu_custom_call.1} parent=27 // pred_check
          %p240 = pneg %p100
        $region34: #{tpu_custom_call.1} parent=27 // pred_check_branch
          %242 = sbr.rel (%p240) target = $region36
        $region35: #{tpu_custom_call.1} parent=27 // pred_region
          %243 = dma.done %s236, 256
        $region36: #{tpu_custom_call.1} parent=27 // pred_fallthru
          _
        %s244 = sand.u32 %s55, 1
        %s245 = scalar_lea.sflag [#allocation7], %s244
        %s246 = sand.u32 %s55, 1
        %s247 = smul.addr %s246, 16
        %s248 = scalar_lea.vmem [#allocation6], %s247
        %p249 = pneg %p68
        %p250 = pneg %p65
        %s251 = sand.u32 %s87, 1
        %s252 = scalar_lea.sflag [#allocation10], %s251
        %s253 = sand.u32 %s87, 1
        %s254 = smul.addr %s253, 16
        %s255 = scalar_lea.vmem [#allocation9], %s254
        %p256 = pneg %p100
        %p257 = pneg %p97
        %p258 = pneg %p126
        %p259 = pneg %p123
        %s260 = sand.u32 %s113, 1
        %s261 = scalar_lea.sflag [#allocation8], %s260
        %s262 = sand.u32 %s113, 1
        %s263 = smul.addr %s262, 8
        %s264 = scalar_lea.vmem [#allocation11], %s263
        %p265 = pneg %p152
        %p266 = pneg %p149
        %s267 = sand.u32 %s139, 1
        %s268 = scalar_lea.sflag [#allocation13], %s267
        %s269 = sand.u32 %s139, 1
        %s270 = smul.addr %s269, 8
        %s271 = scalar_lea.vmem [#allocation12], %s270
        %s272 = sadd.s32 %s33, %s34
        %p273 = scmp.lt.s32.totalorder %s272, 0
        %s274 = scalar_select %p273, %s272, 0
        %s275 = smul.u32 2, %s274
        %s276 = sadd.s32 %s33, %s34
        %p277 = scmp.lt.s32.totalorder %s276, 0
        %s278 = scalar_select %p277, %s276, 0
        %s279 = smul.u32 2, %s278
        %s280 = sadd.s32 %s33, %s34
        %s281 = sld [smem:[#allocation5]]
        %p282 = scmp.eq.s32.totalorder %s34, 0
        // Predicated region
        $region37: #{tpu_custom_call.1} parent=27 // pred_check
          %p283 = pneg %p282
        $region38: #{tpu_custom_call.1} parent=27 // pred_check_branch
          %285 = sbr.rel (%p283) target = $region40
        $region39: #{tpu_custom_call.1} parent=27 // pred_region
          %286 = vst [vmem:[#allocation2] sm:$0xff] 0.0
          %287 = vst [vmem:[#allocation3] sm:$0xff] 0
        $region40: #{tpu_custom_call.1} parent=27 // pred_fallthru
          _
        %s288 = sadd.s32 %s280, 1
        %s289 = smul.u32 %s288, 16
        %p290 = scmp.gt.s32.totalorder %s289, %s281
        %p291 = scmp.le.s32.totalorder %s289, %s281
        // Predicated region
        $region41: #{tpu_custom_call.1} parent=27 // pred_check
          %p292 = pneg %p291
        $region42: #{tpu_custom_call.1} parent=27 // pred_check_branch
          %294 = sbr.rel (%p292) target = $region44
        $region43: #{tpu_custom_call.1} parent=27 // pred_region
          %v295 = vld [vmem:[%s230] sm:$0xff]
          %v296 = vld [vmem:[%s230 + $0x8] sm:$0xff]
          %v297 = vld [vmem:[%s239] sm:$0xff]
          %v298 = vld [vmem:[%s239 + $0x8] sm:$0xff]
          %vm299 = vcmp.ge.f32.partialorder %v297, 0.6
          %vm300 = vcmp.ge.f32.partialorder %v298, 0.6
          %vm301 = vcmp.le.f32.partialorder %v297, 0.45
          %vm302 = vcmp.le.f32.partialorder %v298, 0.45
          %vm303 = vmor %vm299, %vm301
          %vm304 = vmor %vm300, %vm302
          %vm305 = vcmp.gt.f32.partialorder %v297, 0.5
          %vm306 = vcmp.gt.f32.partialorder %v298, 0.5
          %v307 = vsub.f32 1.0, %v295
          %v308 = vsub.f32 1.0, %v296
          %v309 = vsel %vm305, %v295, %v307
          %v310 = vsel %vm306, %v296, %v308
          %v311 = vlog2.pop %v309
          %v312 = vmul.f32 %v311, 0.6931472
          %v313 = vlog2.pop %v310
          %v314 = vmul.f32 %v313, 0.6931472
          %v315 = vmax.f32 %v312, -100.0
          %v316 = vmax.f32 %v314, -100.0
          %v317 = vsub.f32 0.0, %v315
          %v318 = vsub.f32 0.0, %v316
          %v319 = vsel %vm303, %v317, 0.0
          %v320 = vsel %vm304, %v318, 0.0
          %v321 = vld [vmem:[#allocation2] sm:$0xff]
          %v322 = vadd.f32 %v319, %v320
          %v323 = vadd.f32 %v321, %v322
          %324 = vst [vmem:[#allocation2] sm:$0xff] %v323
          %v325 = vld [vmem:[#allocation3] sm:$0xff]
          %v326 = vsel %vm303, 1, 0
          %v327 = vsel %vm304, 1, 0
          %v328 = vadd.s32 %v326, %v327
          %v329 = vadd.s32 %v325, %v328
          %330 = vst [vmem:[#allocation3] sm:$0xff] %v329
        $region44: #{tpu_custom_call.1} parent=27 // pred_fallthru
          _
        // Predicated region
        $region45: #{tpu_custom_call.1} parent=27 // pred_check
          %p331 = pneg %p290
        $region46: #{tpu_custom_call.1} parent=27 // pred_check_branch
          %333 = sbr.rel (%p331) target = $region48
        $region47: #{tpu_custom_call.1} parent=27 // pred_region
          %v334 = vlaneseq
          %v335 = vshrl.u32 %v334, 7
          %v336 = vadd.s32 %v335, 8
          %s337 = smul.u32 %s280, 16
          %v338 = vstv %s337
          %v339 = vadd.s32 %v338, %v335
          %v340 = vadd.s32 %v338, %v336
          %v341 = vstv %s281
          %vm342 = vcmp.lt.s32.totalorder %v339, %v341
          %vm343 = vcmp.lt.s32.totalorder %v340, %v341
          %v344 = vld [vmem:[%s230] sm:$0xff]
          %v345 = vld [vmem:[%s230 + $0x8] sm:$0xff]
          %v346 = vld [vmem:[%s239] sm:$0xff]
          %v347 = vld [vmem:[%s239 + $0x8] sm:$0xff]
          %vm348 = vcmp.ge.f32.partialorder %v346, 0.6
          %vm349 = vcmp.ge.f32.partialorder %v347, 0.6
          %vm350 = vcmp.le.f32.partialorder %v346, 0.45
          %vm351 = vcmp.le.f32.partialorder %v347, 0.45
          %vm352 = vmor %vm348, %vm350
          %vm353 = vmor %vm349, %vm351
          %vm354 = vmand %vm352, %vm342
          %vm355 = vmand %vm353, %vm343
          %vm356 = vcmp.gt.f32.partialorder %v346, 0.5
          %vm357 = vcmp.gt.f32.partialorder %v347, 0.5
          %v358 = vsub.f32 1.0, %v344
          %v359 = vsub.f32 1.0, %v345
          %v360 = vsel %vm356, %v344, %v358
          %v361 = vsel %vm357, %v345, %v359
          %v362 = vlog2.pop %v360
          %v363 = vmul.f32 %v362, 0.6931472
          %v364 = vlog2.pop %v361
          %v365 = vmul.f32 %v364, 0.6931472
          %v366 = vmax.f32 %v363, -100.0
          %v367 = vmax.f32 %v365, -100.0
          %v368 = vsub.f32 0.0, %v366
          %v369 = vsub.f32 0.0, %v367
          %v370 = vsel %vm354, %v368, 0.0
          %v371 = vsel %vm355, %v369, 0.0
          %v372 = vld [vmem:[#allocation2] sm:$0xff]
          %v373 = vadd.f32 %v370, %v371
          %v374 = vadd.f32 %v372, %v373
          %375 = vst [vmem:[#allocation2] sm:$0xff] %v374
          %v376 = vld [vmem:[#allocation3] sm:$0xff]
          %v377 = vsel %vm354, 1, 0
          %v378 = vsel %vm355, 1, 0
          %v379 = vadd.s32 %v377, %v378
          %v380 = vadd.s32 %v376, %v379
          %381 = vst [vmem:[#allocation3] sm:$0xff] %v380
        $region48: #{tpu_custom_call.1} parent=27 // pred_fallthru
          _
        // Predicated region
        $region49: #{tpu_custom_call.1} parent=27 // pred_check
          %p382 = pneg %p282
        $region50: #{tpu_custom_call.1} parent=27 // pred_check_branch
          %384 = sbr.rel (%p382) target = $region52
        $region51: #{tpu_custom_call.1} parent=27 // pred_region
          %v385 = vld [vmem:[#allocation2] sm:$0xff]
          %386 = vst [vmem:[%s264] sm:$0xff] %v385
          %v387 = vld [vmem:[#allocation3] sm:$0xff]
          %388 = vst [vmem:[%s271] sm:$0xff] %v387
        $region52: #{tpu_custom_call.1} parent=27 // pred_fallthru
          _
        %s389 = sand.u32 %s113, 1
        %s390 = scalar_lea.sflag [#allocation8], %s389
        %s391 = sand.u32 %s113, 1
        %s392 = smul.addr %s391, 8
        %s393 = scalar_lea.vmem [#allocation11], %s392
        %s394 = sand.u32 %s139, 1
        %s395 = scalar_lea.sflag [#allocation13], %s394
        %s396 = sand.u32 %s139, 1
        %s397 = smul.addr %s396, 8
        %s398 = scalar_lea.vmem [#allocation12], %s397
        // Predicated region
        $region53: #{tpu_custom_call.1} parent=27 // pred_check
          %p399 = pneg %p123
        $region54: #{tpu_custom_call.1} parent=27 // pred_check_branch
          %401 = sbr.rel (%p399) target = $region56
        $region55: #{tpu_custom_call.1} parent=27 // pred_region
          %s403 = ssub.s32 128, 128
          %404 = vsyncadd %s390, %s403
          %s405 = smul.addr %s33, 128
          %s406 = scalar_lea.hbm %s3, %s405
          %s408 = sshll.u32 %s393, 4
          %s409 = int_to_ptr.vmem [resolvable:$true] %s408
          %411 = dma.vmem_to_hbm [thread:$0]  %s409, 128, %s406, %s390
        $region56: #{tpu_custom_call.1} parent=27 // pred_fallthru
          _
        // Predicated region
        $region57: #{tpu_custom_call.1} parent=27 // pred_check
          %p412 = pneg %p149
        $region58: #{tpu_custom_call.1} parent=27 // pred_check_branch
          %414 = sbr.rel (%p412) target = $region60
        $region59: #{tpu_custom_call.1} parent=27 // pred_region
          %s416 = ssub.s32 128, 128
          %417 = vsyncadd %s395, %s416
          %s418 = smul.addr %s33, 128
          %s419 = scalar_lea.hbm %s4, %s418
          %s421 = sshll.u32 %s398, 4
          %s422 = int_to_ptr.vmem [resolvable:$true] %s421
          %424 = dma.vmem_to_hbm [thread:$0]  %s422, 128, %s419, %s395
        $region60: #{tpu_custom_call.1} parent=27 // pred_fallthru
          _
      $region28: #{tpu_custom_call.1} parent=5 // pred_fallthru
        _
      %p425 = scmp.le.s32.totalorder 2, %s24
      // Predicated region
      $region61: #{tpu_custom_call.1} parent=5 // pred_check
        %p426 = pneg %p425
      $region62: #{tpu_custom_call.1} parent=5 // pred_check_branch
        %428 = sbr.rel (%p426) target = $region64
      $region63: #{tpu_custom_call.1} parent=5 // pred_region
        %s429 = ssub.s32 %s24, 2
        // Predicated region
        $region65: #{tpu_custom_call.1} parent=63 // pred_check
          %p430 = pneg %p129
        $region66: #{tpu_custom_call.1} parent=63 // pred_check_branch
          %432 = sbr.rel (%p430) target = $region68
        $region67: #{tpu_custom_call.1} parent=63 // pred_region
          %s433 = sand.u32 %s114, 1
          %s434 = scalar_lea.sflag [#allocation8], %s433
          %s435 = sand.u32 %s114, 1
          %s436 = smul.addr %s435, 8
          %s437 = scalar_lea.vmem [#allocation11], %s436
          %438 = dma.done %s434, 128
        $region68: #{tpu_custom_call.1} parent=63 // pred_fallthru
          _
        // Predicated region
        $region69: #{tpu_custom_call.1} parent=63 // pred_check
          %p439 = pneg %p155
        $region70: #{tpu_custom_call.1} parent=63 // pred_check_branch
          %441 = sbr.rel (%p439) target = $region72
        $region71: #{tpu_custom_call.1} parent=63 // pred_region
          %s442 = sand.u32 %s140, 1
          %s443 = scalar_lea.sflag [#allocation13], %s442
          %s444 = sand.u32 %s140, 1
          %s445 = smul.addr %s444, 8
          %s446 = scalar_lea.vmem [#allocation12], %s445
          %447 = dma.done %s443, 128
        $region72: #{tpu_custom_call.1} parent=63 // pred_fallthru
          _
      $region64: #{tpu_custom_call.1} parent=5 // pred_fallthru
        _
    $region6: #{tpu_custom_call.1} parent=1 // loop_footer
      %s28 = sadd.s32 1, %s24
    $region7: #{tpu_custom_call.1} parent=1 // loop_footer_branch
      %23 = sbr.rel target = $region3
    $region8: #{tpu_custom_call.1} parent=1 // loop_exit
      _
    %448 = vsyncpa [#allocation7], 1
    %s449 = scalar_lea.sflag [#allocation7], 1
    %450 = vsyncpa %s449, 1
    %451 = vsyncpa [#allocation10], 1
    %s452 = scalar_lea.sflag [#allocation10], 1
    %453 = vsyncpa %s452, 1
    %454 = vsyncpa [#allocation8], 1
    %s455 = scalar_lea.sflag [#allocation8], 1
    %456 = vsyncpa %s455, 1
    %457 = vsyncpa [#allocation13], 1
    %s458 = scalar_lea.sflag [#allocation13], 1
    %459 = vsyncpa %s458, 1

</llo_original>
